<compile_context>
chip_gen: v6e
topology: v6e:2x2x1
jax: 0.10.0
libtpu: 0.0.40
codegen_flags: <defaults>
</compile_context>

<pallas_src>
import functools

import jax
import jax.numpy as jnp
from jax.experimental import pallas as pl
from jax.experimental.pallas import tpu as pltpu

_LANES = 128
_SUBLANES = 8


def _round_up(x, m):
    return ((x + m - 1) // m) * m


def _cdiv(a, b):
    return (a + b - 1) // b


def _actor_kernel(x_ref, w1_ref, w_hid_ref, w_out_ref, b_hid_ref, b_out_ref,
                  out_ref):
    """One batch tile of ActorSAC.forward.

    x_ref    : (TB, F_in)        state rows (F_in = 8-rounded state_dim)
    w1_ref   : (F_in, F_hid)     net_state[0] weight, (in, out) layout
    w_hid_ref: (2, F_hid, F_hid) net_state[2], net_a_avg[0] weights
    w_out_ref: (F_hid, F_out)    net_a_avg[2] weight
    b_hid_ref: (3, 1, F_hid)     biases of the three mid-width Linears
    b_out_ref: (1, F_out)        net_a_avg[2] bias
    out_ref  : (TB, F_out)       lane-dense output; cols >= action_dim are pad
    """
    x = x_ref[...]

    # net_state: Linear -> ReLU -> Linear -> ReLU
    h = jnp.dot(x, w1_ref[...], preferred_element_type=jnp.float32) + b_hid_ref[0]
    h = jnp.maximum(h, 0.0)
    h = jnp.dot(h, w_hid_ref[0], preferred_element_type=jnp.float32) + b_hid_ref[1]
    h = jnp.maximum(h, 0.0)

    # net_a_avg: Linear -> Hardswish -> Linear, then tanh
    a = jnp.dot(h, w_hid_ref[1], preferred_element_type=jnp.float32) + b_hid_ref[2]
    a = a * jnp.clip(a + 3.0, 0.0, 6.0) * (1.0 / 6.0)          # Hardswish
    y = jnp.dot(a, w_out_ref[...], preferred_element_type=jnp.float32) + b_out_ref[...]

    out_ref[...] = jnp.tanh(y)


def _choose_tiling(batch, block_batch):
    """Tight batch tiling; >= 2 grid steps when batch >= 16 (v7x dual-TC)."""
    ntiles = max(_cdiv(batch, block_batch), 2 if batch >= 16 else 1)
    tb = _round_up(max(_cdiv(batch, ntiles), 1), _SUBLANES)
    return tb, ntiles, tb * ntiles


@functools.partial(jax.jit, static_argnames=("block_batch",))
def actor_forward_padded(state, params, block_batch=2048):
    """Returns the padded (B_pad, F_out) output slab; caller slices it."""
    w1, w_hid, w_out, b_hid, b_out = params
    B, S = state.shape
    F_in = w1.shape[0]
    F_hid = w_hid.shape[-1]
    F_out = w_out.shape[-1]

    TB, ntiles, B_pad = _choose_tiling(B, block_batch)

    # Minimal host-side padding: only rows up to B_pad and columns up to the
    # 8-rounded state_dim (zero rows/cols are mathematically exact since the
    # corresponding weight rows are zero).  No pad at all in the common case.
    x = state
    if (B_pad, F_in) != (B, S):
        x = jnp.zeros((B_pad, F_in), state.dtype).at[:B, :S].set(state)

    itemsize = jnp.dtype(w1.dtype).itemsize
    weight_bytes = itemsize * (w1.size + w_hid.size + w_out.size
                               + b_hid.size + b_out.size)

    out = pl.pallas_call(
        _actor_kernel,
        out_shape=jax.ShapeDtypeStruct((B_pad, F_out), jnp.float32),
        grid_spec=pltpu.PrefetchScalarGridSpec(
            num_scalar_prefetch=0,
            grid=(ntiles,),
            in_specs=[
                pl.BlockSpec((TB, F_in), lambda i: (i, 0)),          # state tile
                pl.BlockSpec((F_in, F_hid), lambda i: (0, 0)),       # w1 (resident)
                pl.BlockSpec((2, F_hid, F_hid), lambda i: (0, 0, 0)),  # w2, wa1
                pl.BlockSpec((F_hid, F_out), lambda i: (0, 0)),      # wa2
                pl.BlockSpec((3, 1, F_hid), lambda i: (0, 0, 0)),    # b1, b2, ba1
                pl.BlockSpec((1, F_out), lambda i: (0, 0)),          # ba2
            ],
            out_specs=pl.BlockSpec((TB, F_out), lambda i: (i, 0)),
        ),
        compiler_params=pltpu.CompilerParams(
            dimension_semantics=("parallel",)),
        cost_estimate=pl.CostEstimate(
            flops=2 * B_pad * (F_in * F_hid + 2 * F_hid * F_hid + F_hid * F_out),
            transcendentals=B_pad * F_out,
            bytes_accessed=4 * B_pad * (F_in + F_out) + weight_bytes,
        ),
    )(x, w1, w_hid, w_out, b_hid, b_out)

    return out


def init_params(key, state_dim, mid_dim, action_dim):
    """PyTorch-style nn.Linear init (uniform +-1/sqrt(fan_in)).

    Weights are stored transposed relative to nn.Linear, i.e. (in, out), so the
    kernel computes y = x @ W + b.
    """
    def linear(k, fan_in, fan_out):
        kw, kb = jax.random.split(k)
        bound = 1.0 / (fan_in ** 0.5)
        w = jax.random.uniform(kw, (fan_in, fan_out), jnp.float32, -bound, bound)
        b = jax.random.uniform(kb, (1, fan_out), jnp.float32, -bound, bound)
        return w, b

    keys = jax.random.split(key, 4)
    w1, b1 = linear(keys[0], state_dim, mid_dim)      # net_state[0]
    w2, b2 = linear(keys[1], mid_dim, mid_dim)        # net_state[2]
    wa1, ba1 = linear(keys[2], mid_dim, mid_dim)      # net_a_avg[0]
    wa2, ba2 = linear(keys[3], mid_dim, action_dim)   # net_a_avg[2]
    return (w1, b1, w2, b2, wa1, ba1, wa2, ba2)


def pack_params(raw_params, param_dtype=jnp.float32):
    """Pad/pack weights with decoupled feature widths.

    F_in  = round_up(state_dim, 8)     (contraction dim of the first matmul)
    F_hid = round_up(mid_dim, 128)     (lane-dense hidden width)
    F_out = round_up(action_dim, 128)  (lane-dense output width)
    Zero padding is mathematically exact.  param_dtype=jnp.bfloat16 halves
    resident weight VMEM / MXU passes (accumulation stays f32 in the kernel).
    """
    w1, b1, w2, b2, wa1, ba1, wa2, ba2 = raw_params
    S = w1.shape[0]
    M = w2.shape[0]
    A = wa2.shape[1]
    F_in = _round_up(S, _SUBLANES)
    F_hid = _round_up(M, _LANES)
    F_out = _round_up(A, _LANES)

    def pad(a, shape):
        out = jnp.zeros(shape, param_dtype)
        idx = tuple(slice(0, s) for s in a.shape)
        return out.at[idx].set(a.astype(param_dtype))

    w1_p = pad(w1, (F_in, F_hid))
    w_hid = jnp.stack([pad(w2, (F_hid, F_hid)), pad(wa1, (F_hid, F_hid))])
    w_out = pad(wa2, (F_hid, F_out))
    b_hid = jnp.stack([pad(b1, (1, F_hid)), pad(b2, (1, F_hid)),
                       pad(ba1, (1, F_hid))])
    b_out = pad(ba2, (1, F_out))
    return (w1_p, w_hid, w_out, b_hid, b_out)


def reference_forward(state, raw_params):
    """Pure-JAX reference of ActorSAC.forward (for self-check)."""
    w1, b1, w2, b2, wa1, ba1, wa2, ba2 = raw_params
    h = jnp.maximum(state @ w1 + b1, 0.0)
    h = jnp.maximum(h @ w2 + b2, 0.0)
    a = h @ wa1 + ba1
    a = a * jnp.clip(a + 3.0, 0.0, 6.0) / 6.0
    return jnp.tanh(a @ wa2 + ba2)


if __name__ == "__main__":
    # attention_dim is a constructor arg of the module but unused by forward().
    mid_dim, state_dim, action_dim, attention_dim = 32, 16, 4, 4

    key = jax.random.PRNGKey(0)
    k_params, k_small, k_big = jax.random.split(key, 3)

    raw = init_params(k_params, state_dim, mid_dim, action_dim)
    params = pack_params(raw)

    # Case 1: small batch (single grid step, no padding at all).
    batch = 8
    state = jax.random.normal(k_small, (batch, state_dim), jnp.float32)
    out_pad = jax.block_until_ready(actor_forward_padded(state, params))
    out = out_pad[:batch, :action_dim]          # consumer-side slice
    assert out.shape == (batch, action_dim)
    assert bool(jnp.all(jnp.isfinite(out)))
    ref = reference_forward(state, raw)
    assert bool(jnp.allclose(out, ref, atol=1e-2, rtol=1e-2)), float(
        jnp.max(jnp.abs(out - ref)))

    # Case 2: batch >= 16 -> multi-step parallel grid + padded last tile.
    batch2 = 40
    state2 = jax.random.normal(k_big, (batch2, state_dim), jnp.float32)
    out_pad2 = jax.block_until_ready(actor_forward_padded(state2, params))
    out2 = out_pad2[:batch2, :action_dim]
    ref2 = reference_forward(state2, raw)
    assert bool(jnp.all(jnp.isfinite(out2)))
    assert bool(jnp.allclose(out2, ref2, atol=1e-2, rtol=1e-2)), float(
        jnp.max(jnp.abs(out2 - ref2)))

    print("KERNEL_OK")
</pallas_src>

<mosaic_0001>
module attributes {stable_mosaic.version = 11 : i64} {
  func.func @_actor_kernel(%arg0: i32, %arg1: memref<8x16xf32, #tpu.memory_space<vmem>>, %arg2: memref<16x128xf32, #tpu.memory_space<vmem>>, %arg3: memref<2x128x128xf32, #tpu.memory_space<vmem>>, %arg4: memref<128x128xf32, #tpu.memory_space<vmem>>, %arg5: memref<3x1x128xf32, #tpu.memory_space<vmem>>, %arg6: memref<1x128xf32, #tpu.memory_space<vmem>>, %arg7: memref<8x128xf32, #tpu.memory_space<vmem>>) attributes {dimension_semantics = [#tpu.dimension_semantics<parallel>], iteration_bounds = array<i64: 1>, scalar_prefetch = 0 : i64, scratch_operands = 0 : i64, tpu.core_type = #tpu.core_type<tc>, window_params = [{transform_indices = @transform_0, window_bounds = array<i64: 8, 16>}, {pipeline_mode = #tpu.pipeline_mode<synchronous>, transform_indices = @transform_1, window_bounds = array<i64: 16, 128>}, {pipeline_mode = #tpu.pipeline_mode<synchronous>, transform_indices = @transform_2, window_bounds = array<i64: 2, 128, 128>}, {pipeline_mode = #tpu.pipeline_mode<synchronous>, transform_indices = @transform_3, window_bounds = array<i64: 128, 128>}, {pipeline_mode = #tpu.pipeline_mode<synchronous>, transform_indices = @transform_4, window_bounds = array<i64: 3, 1, 128>}, {pipeline_mode = #tpu.pipeline_mode<synchronous>, transform_indices = @transform_5, window_bounds = array<i64: 1, 128>}, {transform_indices = @transform_6, window_bounds = array<i64: 8, 128>}]} {
    %c0 = arith.constant 0 : index
    %c0_0 = arith.constant 0 : index
    %0 = vector.load %arg1[%c0, %c0_0] : memref<8x16xf32, #tpu.memory_space<vmem>>, vector<8x16xf32>
    %c0_1 = arith.constant 0 : index
    %c0_2 = arith.constant 0 : index
    %1 = vector.load %arg2[%c0_1, %c0_2] : memref<16x128xf32, #tpu.memory_space<vmem>>, vector<16x128xf32>
    %cst = arith.constant dense<0.000000e+00> : vector<8x128xf32>
    %2 = tpu.matmul %0, %1, %cst {dimension_numbers = #tpu.dot_dimension_numbers<[1], [0], [0], [1], [0, 0, 1, 1], [], []>} : vector<8x16xf32>, vector<16x128xf32>, vector<8x128xf32> -> vector<8x128xf32>
    %c0_3 = arith.constant 0 : index
    %c0_4 = arith.constant 0 : index
    %c0_5 = arith.constant 0 : index
    %3 = vector.load %arg5[%c0_3, %c0_4, %c0_5] : memref<3x1x128xf32, #tpu.memory_space<vmem>>, vector<1x1x128xf32>
    %4 = vector.shape_cast %3 : vector<1x1x128xf32> to vector<1x128xf32>
    %5 = vector.broadcast %4 : vector<1x128xf32> to vector<8x128xf32>
    %6 = arith.addf %2, %5 : vector<8x128xf32>
    %cst_6 = arith.constant 0.000000e+00 : f32
    %7 = vector.broadcast %cst_6 : f32 to vector<8x128xf32>
    %8 = arith.maximumf %6, %7 : vector<8x128xf32>
    %c0_7 = arith.constant 0 : index
    %c0_8 = arith.constant 0 : index
    %c0_9 = arith.constant 0 : index
    %9 = vector.load %arg3[%c0_7, %c0_8, %c0_9] : memref<2x128x128xf32, #tpu.memory_space<vmem>>, vector<1x128x128xf32>
    %10 = vector.shape_cast %9 : vector<1x128x128xf32> to vector<128x128xf32>
    %cst_10 = arith.constant dense<0.000000e+00> : vector<8x128xf32>
    %11 = tpu.matmul %8, %10, %cst_10 {dimension_numbers = #tpu.dot_dimension_numbers<[1], [0], [0], [1], [0, 0, 1, 1], [], []>} : vector<8x128xf32>, vector<128x128xf32>, vector<8x128xf32> -> vector<8x128xf32>
    %c1 = arith.constant 1 : index
    %c0_11 = arith.constant 0 : index
    %c0_12 = arith.constant 0 : index
    %12 = vector.load %arg5[%c1, %c0_11, %c0_12] : memref<3x1x128xf32, #tpu.memory_space<vmem>>, vector<1x1x128xf32>
    %13 = vector.shape_cast %12 : vector<1x1x128xf32> to vector<1x128xf32>
    %14 = vector.broadcast %13 : vector<1x128xf32> to vector<8x128xf32>
    %15 = arith.addf %11, %14 : vector<8x128xf32>
    %cst_13 = arith.constant 0.000000e+00 : f32
    %16 = vector.broadcast %cst_13 : f32 to vector<8x128xf32>
    %17 = arith.maximumf %15, %16 : vector<8x128xf32>
    %c1_14 = arith.constant 1 : index
    %c0_15 = arith.constant 0 : index
    %c0_16 = arith.constant 0 : index
    %18 = vector.load %arg3[%c1_14, %c0_15, %c0_16] : memref<2x128x128xf32, #tpu.memory_space<vmem>>, vector<1x128x128xf32>
    %19 = vector.shape_cast %18 : vector<1x128x128xf32> to vector<128x128xf32>
    %cst_17 = arith.constant dense<0.000000e+00> : vector<8x128xf32>
    %20 = tpu.matmul %17, %19, %cst_17 {dimension_numbers = #tpu.dot_dimension_numbers<[1], [0], [0], [1], [0, 0, 1, 1], [], []>} : vector<8x128xf32>, vector<128x128xf32>, vector<8x128xf32> -> vector<8x128xf32>
    %c2 = arith.constant 2 : index
    %c0_18 = arith.constant 0 : index
    %c0_19 = arith.constant 0 : index
    %21 = vector.load %arg5[%c2, %c0_18, %c0_19] : memref<3x1x128xf32, #tpu.memory_space<vmem>>, vector<1x1x128xf32>
    %22 = vector.shape_cast %21 : vector<1x1x128xf32> to vector<1x128xf32>
    %23 = vector.broadcast %22 : vector<1x128xf32> to vector<8x128xf32>
    %24 = arith.addf %20, %23 : vector<8x128xf32>
    %cst_20 = arith.constant 3.000000e+00 : f32
    %25 = vector.broadcast %cst_20 : f32 to vector<8x128xf32>
    %26 = arith.addf %24, %25 : vector<8x128xf32>
    %cst_21 = arith.constant 0.000000e+00 : f32
    %cst_22 = arith.constant 6.000000e+00 : f32
    %27 = vector.broadcast %cst_21 : f32 to vector<8x128xf32>
    %28 = arith.maximumf %27, %26 : vector<8x128xf32>
    %29 = vector.broadcast %cst_22 : f32 to vector<8x128xf32>
    %30 = arith.minimumf %29, %28 : vector<8x128xf32>
    %31 = arith.mulf %24, %30 : vector<8x128xf32>
    %cst_23 = arith.constant 0.166666672 : f32
    %32 = vector.broadcast %cst_23 : f32 to vector<8x128xf32>
    %33 = arith.mulf %31, %32 : vector<8x128xf32>
    %c0_24 = arith.constant 0 : index
    %c0_25 = arith.constant 0 : index
    %34 = vector.load %arg4[%c0_24, %c0_25] : memref<128x128xf32, #tpu.memory_space<vmem>>, vector<128x128xf32>
    %cst_26 = arith.constant dense<0.000000e+00> : vector<8x128xf32>
    %35 = tpu.matmul %33, %34, %cst_26 {dimension_numbers = #tpu.dot_dimension_numbers<[1], [0], [0], [1], [0, 0, 1, 1], [], []>} : vector<8x128xf32>, vector<128x128xf32>, vector<8x128xf32> -> vector<8x128xf32>
    %c0_27 = arith.constant 0 : index
    %c0_28 = arith.constant 0 : index
    %36 = vector.load %arg6[%c0_27, %c0_28] : memref<1x128xf32, #tpu.memory_space<vmem>>, vector<1x128xf32>
    %37 = vector.broadcast %36 : vector<1x128xf32> to vector<8x128xf32>
    %38 = arith.addf %35, %37 : vector<8x128xf32>
    %39 = math.tanh %38 : vector<8x128xf32>
    %c0_29 = arith.constant 0 : index
    %c0_30 = arith.constant 0 : index
    %40 = vector.load %arg7[%c0_29, %c0_30] : memref<8x128xf32, #tpu.memory_space<vmem>>, vector<8x128xf32>
    tpu.vector_store %arg7[%c0_29, %c0_30], %39 {strides = array<i32>} : memref<8x128xf32, #tpu.memory_space<vmem>>, vector<8x128xf32>,
    return
  }
  func.func @transform_0(%arg0: i32) -> (i32, i32) {
    %c0_i32 = arith.constant 0 : i32
    %c0_i32_0 = arith.constant 0 : i32
    return %arg0, %c0_i32 : i32, i32
  }
  func.func @transform_1(%arg0: i32) -> (i32, i32) {
    %c0_i32 = arith.constant 0 : i32
    %c0_i32_0 = arith.constant 0 : i32
    %c0_i32_1 = arith.constant 0 : i32
    return %c0_i32, %c0_i32_0 : i32, i32
  }
  func.func @transform_2(%arg0: i32) -> (i32, i32, i32) {
    %c0_i32 = arith.constant 0 : i32
    %c0_i32_0 = arith.constant 0 : i32
    %c0_i32_1 = arith.constant 0 : i32
    %c0_i32_2 = arith.constant 0 : i32
    return %c0_i32, %c0_i32_0, %c0_i32_1 : i32, i32, i32
  }
  func.func @transform_3(%arg0: i32) -> (i32, i32) {
    %c0_i32 = arith.constant 0 : i32
    %c0_i32_0 = arith.constant 0 : i32
    %c0_i32_1 = arith.constant 0 : i32
    return %c0_i32, %c0_i32_0 : i32, i32
  }
  func.func @transform_4(%arg0: i32) -> (i32, i32, i32) {
    %c0_i32 = arith.constant 0 : i32
    %c0_i32_0 = arith.constant 0 : i32
    %c0_i32_1 = arith.constant 0 : i32
    %c0_i32_2 = arith.constant 0 : i32
    return %c0_i32, %c0_i32_0, %c0_i32_1 : i32, i32, i32
  }
  func.func @transform_5(%arg0: i32) -> (i32, i32) {
    %c0_i32 = arith.constant 0 : i32
    %c0_i32_0 = arith.constant 0 : i32
    %c0_i32_1 = arith.constant 0 : i32
    return %c0_i32, %c0_i32_0 : i32, i32
  }
  func.func @transform_6(%arg0: i32) -> (i32, i32) {
    %c0_i32 = arith.constant 0 : i32
    %c0_i32_0 = arith.constant 0 : i32
    return %arg0, %c0_i32 : i32, i32
  }
}

</mosaic_0001>

<llo_original>
// kernel: actor_forward_padded.1
$region0: #{actor_forward_padded.1}
  #allocation0 [shape = 'u32[]', space=smem, size = 0x4, offset = 0x4, fixed_abs, tag = 'smem constant byte address 0x4 - core index']
  #allocation1 [shape = 'u32[144,128]{1,0:T(1,128)}', space=vmem, size = 0x12000, scoped, tag = 'internal scratch']
  %s0 = inlined_call_operand.hbm [shape: f32[8,16], index: 0, kind: input, shape index: {}]
  %s1 = inlined_call_operand.hbm [shape: f32[16,128], index: 1, kind: input, shape index: {}]
  %s2 = inlined_call_operand.hbm [shape: f32[2,128,128], index: 2, kind: input, shape index: {}]
  %s3 = inlined_call_operand.hbm [shape: f32[128,128], index: 3, kind: input, shape index: {}]
  %s4 = inlined_call_operand.vmem [shape: f32[3,1,128], index: 4, kind: input, shape index: {}]
  %s5 = inlined_call_operand.vmem [shape: f32[1,128], index: 5, kind: input, shape index: {}]
  %s6 = inlined_call_operand.hbm [shape: f32[8,128], index: 6, kind: output, shape index: {}]
  %s7 = sld [smem:[#allocation0]]
  $region50: #{actor_forward_padded.1} parent=0
    _
  %s9 = ssub.s32 1, %s7
  %s10 = scalar_select 0, %s9, %s7
  $region1: #{actor_forward_padded.1} parent=0
    #allocation2 [shape = 'u8[4096]{0}', space=vmem, size = 0x1000, scoped, tag = 'input window, operand 0, single buffered']
    #allocation3 [shape = 's32[1]{0}', space=sflag, size = 0x4, scoped, tag = 'scoped memory for actor_forward_padded.1']
    #allocation4 [shape = 's32[1]{0}', space=sflag, size = 0x4, scoped, tag = 'scoped memory for actor_forward_padded.1']
    #allocation5 [shape = 'u8[8192]{0}', space=vmem, size = 0x2000, scoped, tag = 'input window, operand 1, single buffered']
    #allocation6 [shape = 's32[1]{0}', space=sflag, size = 0x4, scoped, tag = 'scoped memory for actor_forward_padded.1']
    #allocation7 [shape = 'u8[131072]{0}', space=vmem, size = 0x20000, scoped, tag = 'input window, operand 2, single buffered']
    #allocation8 [shape = 'u8[65536]{0}', space=vmem, size = 0x10000, scoped, tag = 'input window, operand 3, single buffered']
    #allocation9 [shape = 's32[1]{0}', space=sflag, size = 0x4, scoped, tag = 'scoped memory for actor_forward_padded.1']
    #allocation10 [shape = 'u8[4096]{0}', space=vmem, size = 0x1000, scoped, tag = 'output window, operand 0, single buffered']
    %11 = vsyncpa [#allocation3], 0
    %12 = vsyncpa [#allocation6], 0
    %13 = vsyncpa [#allocation9], 0
    %14 = vsyncpa [#allocation4], 0
    // Predicated region
    $region2: #{actor_forward_padded.1} parent=1 // pred_check
      _
    $region3: #{actor_forward_padded.1} parent=1 // pred_check_branch
      %16 = sbr.rel (0) target = $region5
    $region4: #{actor_forward_padded.1} parent=1 // pred_region
      %s18 = ssub.s32 128, 128
      %19 = vsyncadd [#allocation3], %s18
      %s21 = sshll.u32 [#allocation2], 4
      %s22 = int_to_ptr.vmem [resolvable:$true] %s21
      %24 = dma.hbm_to_vmem [thread:$0]  %s0, 128, %s22, [#allocation3]
    $region5: #{actor_forward_padded.1} parent=1 // pred_fallthru
      _
    // Predicated region
    $region6: #{actor_forward_padded.1} parent=1 // pred_check
      _
    $region7: #{actor_forward_padded.1} parent=1 // pred_check_branch
      %26 = sbr.rel (0) target = $region9
    $region8: #{actor_forward_padded.1} parent=1 // pred_region
      %s28 = ssub.s32 256, 256
      %29 = vsyncadd [#allocation6], %s28
      %s30 = sshll.u32 [#allocation5], 4
      %s31 = int_to_ptr.vmem [resolvable:$true] %s30
      %36 = dma.hbm_to_vmem [thread:$0]  %s1, 256, %s31, [#allocation6], 128, 128, 8
    $region9: #{actor_forward_padded.1} parent=1 // pred_fallthru
      _
    // Predicated region
    $region10: #{actor_forward_padded.1} parent=1 // pred_check
      _
    $region11: #{actor_forward_padded.1} parent=1 // pred_check_branch
      %38 = sbr.rel (0) target = $region13
    $region12: #{actor_forward_padded.1} parent=1 // pred_region
      %s40 = ssub.s32 4096, 4096
      %41 = vsyncadd [#allocation6], %s40
      %s42 = sshll.u32 [#allocation7], 4
      %s43 = int_to_ptr.vmem [resolvable:$true] %s42
      %48 = dma.hbm_to_vmem [thread:$0]  %s2, 4096, %s43, [#allocation6], 128, 128, 8
    $region13: #{actor_forward_padded.1} parent=1 // pred_fallthru
      _
    // Predicated region
    $region14: #{actor_forward_padded.1} parent=1 // pred_check
      _
    $region15: #{actor_forward_padded.1} parent=1 // pred_check_branch
      %50 = sbr.rel (0) target = $region17
    $region16: #{actor_forward_padded.1} parent=1 // pred_region
      %s52 = ssub.s32 2048, 2048
      %53 = vsyncadd [#allocation9], %s52
      %s54 = sshll.u32 [#allocation8], 4
      %s55 = int_to_ptr.vmem [resolvable:$true] %s54
      %60 = dma.hbm_to_vmem [thread:$0]  %s3, 2048, %s55, [#allocation9], 128, 128, 8
    $region17: #{actor_forward_padded.1} parent=1 // pred_fallthru
      _
    // Predicated region
    $region18: #{actor_forward_padded.1} parent=1 // pred_check
      _
    $region19: #{actor_forward_padded.1} parent=1 // pred_check_branch
      %62 = sbr.rel (0) target = $region21
    $region20: #{actor_forward_padded.1} parent=1 // pred_region
      _
    $region21: #{actor_forward_padded.1} parent=1 // pred_fallthru
      _
    // Predicated region
    $region22: #{actor_forward_padded.1} parent=1 // pred_check
      _
    $region23: #{actor_forward_padded.1} parent=1 // pred_check_branch
      %64 = sbr.rel (0) target = $region25
    $region24: #{actor_forward_padded.1} parent=1 // pred_region
      _
    $region25: #{actor_forward_padded.1} parent=1 // pred_fallthru
      _
    // Predicated region
    $region26: #{actor_forward_padded.1} parent=1 // pred_check
      _
    $region27: #{actor_forward_padded.1} parent=1 // pred_check_branch
      %66 = sbr.rel (0) target = $region29
    $region28: #{actor_forward_padded.1} parent=1 // pred_region
      %67 = dma.done [#allocation3], 128
    $region29: #{actor_forward_padded.1} parent=1 // pred_fallthru
      _
    // Predicated region
    $region30: #{actor_forward_padded.1} parent=1 // pred_check
      _
    $region31: #{actor_forward_padded.1} parent=1 // pred_check_branch
      %69 = sbr.rel (0) target = $region33
    $region32: #{actor_forward_padded.1} parent=1 // pred_region
      %70 = dma.done [#allocation6], 256
    $region33: #{actor_forward_padded.1} parent=1 // pred_fallthru
      _
    // Predicated region
    $region34: #{actor_forward_padded.1} parent=1 // pred_check
      _
    $region35: #{actor_forward_padded.1} parent=1 // pred_check_branch
      %72 = sbr.rel (0) target = $region37
    $region36: #{actor_forward_padded.1} parent=1 // pred_region
      %73 = dma.done [#allocation6], 4096
    $region37: #{actor_forward_padded.1} parent=1 // pred_fallthru
      _
    // Predicated region
    $region38: #{actor_forward_padded.1} parent=1 // pred_check
      _
    $region39: #{actor_forward_padded.1} parent=1 // pred_check_branch
      %75 = sbr.rel (0) target = $region41
    $region40: #{actor_forward_padded.1} parent=1 // pred_region
      %76 = dma.done [#allocation9], 2048
    $region41: #{actor_forward_padded.1} parent=1 // pred_fallthru
      _
    %v77 = vld [vmem:[#allocation2] sm:$0xff]
    %v78 = vld [vmem:[#allocation5] sm:$0xff]
    %v79 = vld [vmem:[#allocation5 + $0x8] sm:$0xff]
    %v80 = vld [vmem:[%s4] sm:$0x1]
    %v82 = vlaneseq
    %v83 = vshrl.u32 %v82, 7
    %v84 = vsub.s32 0, %v83
    %v85 = vrot.slane %v80, %v84
    %vm87 = vcmask 130048
    %v89 = vsel %vm87, %v77, 0
    %91 = vmatprep.subr.mxu0 0.0
    %92 = vmatpush1.msra.mxu0 0.0
    %93 = vmatprep.subr.mxu0 0.0
    %94 = vmatpush1.msra.mxu0 0.0
    %95 = vmatprep.subr.mxu0 0.0
    %96 = vmatpush1.msra.mxu0 0.0
    %97 = vmatprep.subr.mxu0 0.0
    %98 = vmatpush1.msra.mxu0 0.0
    %99 = vmatprep.subr.mxu0 0.0
    %100 = vmatpush1.msra.mxu0 0.0
    %101 = vmatprep.subr.mxu0 0.0
    %102 = vmatpush1.msra.mxu0 0.0
    %103 = vmatprep.subr.mxu0 0.0
    %104 = vmatpush1.msra.mxu0 0.0
    %105 = vmatprep.subr.mxu0 0.0
    %106 = vmatpush1.msra.mxu0 0.0
    %107 = vmatprep.subr.mxu0 0.0
    %108 = vmatpush1.msra.mxu0 0.0
    %109 = vmatprep.subr.mxu0 0.0
    %110 = vmatpush1.msra.mxu0 0.0
    %111 = vmatprep.subr.mxu0 0.0
    %112 = vmatpush1.msra.mxu0 0.0
    %113 = vmatprep.subr.mxu0 0.0
    %114 = vmatpush1.msra.mxu0 0.0
    %115 = vmatprep.subr.mxu0 0.0
    %116 = vmatpush1.msra.mxu0 0.0
    %117 = vmatprep.subr.mxu0 0.0
    %118 = vmatpush1.msra.mxu0 0.0
    %119 = vmatprep.subr.mxu0 0.0
    %120 = vmatpush1.msra.mxu0 %v79
    %121 = vmatprep.subr.mxu0 0.0
    %122 = vmatpush1.msra.mxu0 %v78
    %123 = vmatprep.subr.mxu0 0.0
    %124 = vmatpush2.msra.mxu0 0.0
    %125 = vmatprep.subr.mxu0 0.0
    %126 = vmatpush2.msra.mxu0 0.0
    %127 = vmatprep.subr.mxu0 0.0
    %128 = vmatpush2.msra.mxu0 0.0
    %129 = vmatprep.subr.mxu0 0.0
    %130 = vmatpush2.msra.mxu0 0.0
    %131 = vmatprep.subr.mxu0 0.0
    %132 = vmatpush2.msra.mxu0 0.0
    %133 = vmatprep.subr.mxu0 0.0
    %134 = vmatpush2.msra.mxu0 0.0
    %135 = vmatprep.subr.mxu0 0.0
    %136 = vmatpush2.msra.mxu0 0.0
    %137 = vmatprep.subr.mxu0 0.0
    %138 = vmatpush2.msra.mxu0 0.0
    %139 = vmatprep.subr.mxu0 0.0
    %140 = vmatpush2.msra.mxu0 0.0
    %141 = vmatprep.subr.mxu0 0.0
    %142 = vmatpush2.msra.mxu0 0.0
    %143 = vmatprep.subr.mxu0 0.0
    %144 = vmatpush2.msra.mxu0 0.0
    %145 = vmatprep.subr.mxu0 0.0
    %146 = vmatpush2.msra.mxu0 0.0
    %147 = vmatprep.subr.mxu0 0.0
    %148 = vmatpush2.msra.mxu0 0.0
    %149 = vmatprep.subr.mxu0 0.0
    %150 = vmatpush2.msra.mxu0 0.0
    %151 = vmatprep.subr.mxu0 0.0
    %152 = vmatpush2.msra.mxu0 0.0
    %153 = vmatprep.subr.mxu0 0.0
    %154 = vmatpush2.msra.mxu0 0.0
    %155 = vmatprep.mubr.f32.mxu0 0.0
    %156 = vmatmul.mubr.f32.gmra.mxu0 %v89
    %v157 = vpop.f32.mrf.mxu0
    %v158 = vadd.f32 %v85, %v157
    %v159 = vpop.f32.mrf.mxu0
    %160 = vdwg.mxu0
    %v161 = vmax.f32 %v158, 0.0
    %v162 = vld [vmem:[#allocation7] sm:$0xff]
    %v163 = vld [vmem:[#allocation7 + $0x8] sm:$0xff]
    %v164 = vld [vmem:[#allocation7 + $0x10] sm:$0xff]
    %v165 = vld [vmem:[#allocation7 + $0x18] sm:$0xff]
    %v166 = vld [vmem:[#allocation7 + $0x20] sm:$0xff]
    %v167 = vld [vmem:[#allocation7 + $0x28] sm:$0xff]
    %v168 = vld [vmem:[#allocation7 + $0x30] sm:$0xff]
    %v169 = vld [vmem:[#allocation7 + $0x38] sm:$0xff]
    %v170 = vld [vmem:[#allocation7 + $0x40] sm:$0xff]
    %v171 = vld [vmem:[#allocation7 + $0x48] sm:$0xff]
    %v172 = vld [vmem:[#allocation7 + $0x50] sm:$0xff]
    %v173 = vld [vmem:[#allocation7 + $0x58] sm:$0xff]
    %v174 = vld [vmem:[#allocation7 + $0x60] sm:$0xff]
    %v175 = vld [vmem:[#allocation7 + $0x68] sm:$0xff]
    %v176 = vld [vmem:[#allocation7 + $0x70] sm:$0xff]
    %v177 = vld [vmem:[#allocation7 + $0x78] sm:$0xff]
    %s178 = scalar_lea.vmem %s4, 1
    %v179 = vld [vmem:[%s178] sm:$0x1]
    %v181 = vlaneseq
    %v182 = vshrl.u32 %v181, 7
    %v183 = vsub.s32 0, %v182
    %v184 = vrot.slane %v179, %v183
    %186 = vmatprep.subr.mxu0 0.0
    %187 = vmatpush1.msra.mxu0 %v177
    %188 = vmatprep.subr.mxu0 0.0
    %189 = vmatpush1.msra.mxu0 %v176
    %190 = vmatprep.subr.mxu0 0.0
    %191 = vmatpush1.msra.mxu0 %v175
    %192 = vmatprep.subr.mxu0 0.0
    %193 = vmatpush1.msra.mxu0 %v174
    %194 = vmatprep.subr.mxu0 0.0
    %195 = vmatpush1.msra.mxu0 %v173
    %196 = vmatprep.subr.mxu0 0.0
    %197 = vmatpush1.msra.mxu0 %v172
    %198 = vmatprep.subr.mxu0 0.0
    %199 = vmatpush1.msra.mxu0 %v171
    %200 = vmatprep.subr.mxu0 0.0
    %201 = vmatpush1.msra.mxu0 %v170
    %202 = vmatprep.subr.mxu0 0.0
    %203 = vmatpush1.msra.mxu0 %v169
    %204 = vmatprep.subr.mxu0 0.0
    %205 = vmatpush1.msra.mxu0 %v168
    %206 = vmatprep.subr.mxu0 0.0
    %207 = vmatpush1.msra.mxu0 %v167
    %208 = vmatprep.subr.mxu0 0.0
    %209 = vmatpush1.msra.mxu0 %v166
    %210 = vmatprep.subr.mxu0 0.0
    %211 = vmatpush1.msra.mxu0 %v165
    %212 = vmatprep.subr.mxu0 0.0
    %213 = vmatpush1.msra.mxu0 %v164
    %214 = vmatprep.subr.mxu0 0.0
    %215 = vmatpush1.msra.mxu0 %v163
    %216 = vmatprep.subr.mxu0 0.0
    %217 = vmatpush1.msra.mxu0 %v162
    %218 = vmatprep.subr.mxu0 0.0
    %219 = vmatpush2.msra.mxu0 0.0
    %220 = vmatprep.subr.mxu0 0.0
    %221 = vmatpush2.msra.mxu0 0.0
    %222 = vmatprep.subr.mxu0 0.0
    %223 = vmatpush2.msra.mxu0 0.0
    %224 = vmatprep.subr.mxu0 0.0
    %225 = vmatpush2.msra.mxu0 0.0
    %226 = vmatprep.subr.mxu0 0.0
    %227 = vmatpush2.msra.mxu0 0.0
    %228 = vmatprep.subr.mxu0 0.0
    %229 = vmatpush2.msra.mxu0 0.0
    %230 = vmatprep.subr.mxu0 0.0
    %231 = vmatpush2.msra.mxu0 0.0
    %232 = vmatprep.subr.mxu0 0.0
    %233 = vmatpush2.msra.mxu0 0.0
    %234 = vmatprep.subr.mxu0 0.0
    %235 = vmatpush2.msra.mxu0 0.0
    %236 = vmatprep.subr.mxu0 0.0
    %237 = vmatpush2.msra.mxu0 0.0
    %238 = vmatprep.subr.mxu0 0.0
    %239 = vmatpush2.msra.mxu0 0.0
    %240 = vmatprep.subr.mxu0 0.0
    %241 = vmatpush2.msra.mxu0 0.0
    %242 = vmatprep.subr.mxu0 0.0
    %243 = vmatpush2.msra.mxu0 0.0
    %244 = vmatprep.subr.mxu0 0.0
    %245 = vmatpush2.msra.mxu0 0.0
    %246 = vmatprep.subr.mxu0 0.0
    %247 = vmatpush2.msra.mxu0 0.0
    %248 = vmatprep.subr.mxu0 0.0
    %249 = vmatpush2.msra.mxu0 0.0
    %250 = vmatprep.mubr.f32.mxu0 0.0
    %251 = vmatmul.mubr.f32.gmra.mxu0 %v161
    %v252 = vpop.f32.mrf.mxu0
    %v253 = vadd.f32 %v184, %v252
    %v254 = vpop.f32.mrf.mxu0
    %255 = vdwg.mxu0
    %v256 = vmax.f32 %v253, 0.0
    %s257 = scalar_lea.vmem [#allocation7], 128
    %v258 = vld [vmem:[%s257] sm:$0xff]
    %v259 = vld [vmem:[%s257 + $0x8] sm:$0xff]
    %v260 = vld [vmem:[%s257 + $0x10] sm:$0xff]
    %v261 = vld [vmem:[%s257 + $0x18] sm:$0xff]
    %v262 = vld [vmem:[%s257 + $0x20] sm:$0xff]
    %v263 = vld [vmem:[%s257 + $0x28] sm:$0xff]
    %v264 = vld [vmem:[%s257 + $0x30] sm:$0xff]
    %v265 = vld [vmem:[%s257 + $0x38] sm:$0xff]
    %v266 = vld [vmem:[%s257 + $0x40] sm:$0xff]
    %v267 = vld [vmem:[%s257 + $0x48] sm:$0xff]
    %v268 = vld [vmem:[%s257 + $0x50] sm:$0xff]
    %v269 = vld [vmem:[%s257 + $0x58] sm:$0xff]
    %v270 = vld [vmem:[%s257 + $0x60] sm:$0xff]
    %v271 = vld [vmem:[%s257 + $0x68] sm:$0xff]
    %v272 = vld [vmem:[%s257 + $0x70] sm:$0xff]
    %v273 = vld [vmem:[%s257 + $0x78] sm:$0xff]
    %s274 = scalar_lea.vmem %s4, 2
    %v275 = vld [vmem:[%s274] sm:$0x1]
    %v277 = vlaneseq
    %v278 = vshrl.u32 %v277, 7
    %v279 = vsub.s32 0, %v278
    %v280 = vrot.slane %v275, %v279
    %282 = vmatprep.subr.mxu0 0.0
    %283 = vmatpush1.msra.mxu0 %v273
    %284 = vmatprep.subr.mxu0 0.0
    %285 = vmatpush1.msra.mxu0 %v272
    %286 = vmatprep.subr.mxu0 0.0
    %287 = vmatpush1.msra.mxu0 %v271
    %288 = vmatprep.subr.mxu0 0.0
    %289 = vmatpush1.msra.mxu0 %v270
    %290 = vmatprep.subr.mxu0 0.0
    %291 = vmatpush1.msra.mxu0 %v269
    %292 = vmatprep.subr.mxu0 0.0
    %293 = vmatpush1.msra.mxu0 %v268
    %294 = vmatprep.subr.mxu0 0.0
    %295 = vmatpush1.msra.mxu0 %v267
    %296 = vmatprep.subr.mxu0 0.0
    %297 = vmatpush1.msra.mxu0 %v266
    %298 = vmatprep.subr.mxu0 0.0
    %299 = vmatpush1.msra.mxu0 %v265
    %300 = vmatprep.subr.mxu0 0.0
    %301 = vmatpush1.msra.mxu0 %v264
    %302 = vmatprep.subr.mxu0 0.0
    %303 = vmatpush1.msra.mxu0 %v263
    %304 = vmatprep.subr.mxu0 0.0
    %305 = vmatpush1.msra.mxu0 %v262
    %306 = vmatprep.subr.mxu0 0.0
    %307 = vmatpush1.msra.mxu0 %v261
    %308 = vmatprep.subr.mxu0 0.0
    %309 = vmatpush1.msra.mxu0 %v260
    %310 = vmatprep.subr.mxu0 0.0
    %311 = vmatpush1.msra.mxu0 %v259
    %312 = vmatprep.subr.mxu0 0.0
    %313 = vmatpush1.msra.mxu0 %v258
    %314 = vmatprep.subr.mxu0 0.0
    %315 = vmatpush2.msra.mxu0 0.0
    %316 = vmatprep.subr.mxu0 0.0
    %317 = vmatpush2.msra.mxu0 0.0
    %318 = vmatprep.subr.mxu0 0.0
    %319 = vmatpush2.msra.mxu0 0.0
    %320 = vmatprep.subr.mxu0 0.0
    %321 = vmatpush2.msra.mxu0 0.0
    %322 = vmatprep.subr.mxu0 0.0
    %323 = vmatpush2.msra.mxu0 0.0
    %324 = vmatprep.subr.mxu0 0.0
    %325 = vmatpush2.msra.mxu0 0.0
    %326 = vmatprep.subr.mxu0 0.0
    %327 = vmatpush2.msra.mxu0 0.0
    %328 = vmatprep.subr.mxu0 0.0
    %329 = vmatpush2.msra.mxu0 0.0
    %330 = vmatprep.subr.mxu0 0.0
    %331 = vmatpush2.msra.mxu0 0.0
    %332 = vmatprep.subr.mxu0 0.0
    %333 = vmatpush2.msra.mxu0 0.0
    %334 = vmatprep.subr.mxu0 0.0
    %335 = vmatpush2.msra.mxu0 0.0
    %336 = vmatprep.subr.mxu0 0.0
    %337 = vmatpush2.msra.mxu0 0.0
    %338 = vmatprep.subr.mxu0 0.0
    %339 = vmatpush2.msra.mxu0 0.0
    %340 = vmatprep.subr.mxu0 0.0
    %341 = vmatpush2.msra.mxu0 0.0
    %342 = vmatprep.subr.mxu0 0.0
    %343 = vmatpush2.msra.mxu0 0.0
    %344 = vmatprep.subr.mxu0 0.0
    %345 = vmatpush2.msra.mxu0 0.0
    %346 = vmatprep.mubr.f32.mxu0 0.0
    %347 = vmatmul.mubr.f32.gmra.mxu0 %v256
    %v348 = vpop.f32.mrf.mxu0
    %v349 = vadd.f32 %v280, %v348
    %v350 = vpop.f32.mrf.mxu0
    %351 = vdwg.mxu0
    %v352 = vadd.f32 %v349, 3.0
    %v353 = vmax.f32 %v352, 0.0
    %v354 = vmin.f32 %v353, 6.0
    %v355 = vmul.f32 %v349, %v354
    %v356 = vmul.f32 %v355, 0.16666667
    %v357 = vld [vmem:[#allocation8] sm:$0xff]
    %v358 = vld [vmem:[#allocation8 + $0x8] sm:$0xff]
    %v359 = vld [vmem:[#allocation8 + $0x10] sm:$0xff]
    %v360 = vld [vmem:[#allocation8 + $0x18] sm:$0xff]
    %v361 = vld [vmem:[#allocation8 + $0x20] sm:$0xff]
    %v362 = vld [vmem:[#allocation8 + $0x28] sm:$0xff]
    %v363 = vld [vmem:[#allocation8 + $0x30] sm:$0xff]
    %v364 = vld [vmem:[#allocation8 + $0x38] sm:$0xff]
    %v365 = vld [vmem:[#allocation8 + $0x40] sm:$0xff]
    %v366 = vld [vmem:[#allocation8 + $0x48] sm:$0xff]
    %v367 = vld [vmem:[#allocation8 + $0x50] sm:$0xff]
    %v368 = vld [vmem:[#allocation8 + $0x58] sm:$0xff]
    %v369 = vld [vmem:[#allocation8 + $0x60] sm:$0xff]
    %v370 = vld [vmem:[#allocation8 + $0x68] sm:$0xff]
    %v371 = vld [vmem:[#allocation8 + $0x70] sm:$0xff]
    %v372 = vld [vmem:[#allocation8 + $0x78] sm:$0xff]
    %v373 = vld [vmem:[%s5] sm:$0x1]
    %v375 = vlaneseq
    %v376 = vshrl.u32 %v375, 7
    %v377 = vsub.s32 0, %v376
    %v378 = vrot.slane %v373, %v377
    %380 = vmatprep.subr.mxu0 0.0
    %381 = vmatpush1.msra.mxu0 %v372
    %382 = vmatprep.subr.mxu0 0.0
    %383 = vmatpush1.msra.mxu0 %v371
    %384 = vmatprep.subr.mxu0 0.0
    %385 = vmatpush1.msra.mxu0 %v370
    %386 = vmatprep.subr.mxu0 0.0
    %387 = vmatpush1.msra.mxu0 %v369
    %388 = vmatprep.subr.mxu0 0.0
    %389 = vmatpush1.msra.mxu0 %v368
    %390 = vmatprep.subr.mxu0 0.0
    %391 = vmatpush1.msra.mxu0 %v367
    %392 = vmatprep.subr.mxu0 0.0
    %393 = vmatpush1.msra.mxu0 %v366
    %394 = vmatprep.subr.mxu0 0.0
    %395 = vmatpush1.msra.mxu0 %v365
    %396 = vmatprep.subr.mxu0 0.0
    %397 = vmatpush1.msra.mxu0 %v364
    %398 = vmatprep.subr.mxu0 0.0
    %399 = vmatpush1.msra.mxu0 %v363
    %400 = vmatprep.subr.mxu0 0.0
    %401 = vmatpush1.msra.mxu0 %v362
    %402 = vmatprep.subr.mxu0 0.0
    %403 = vmatpush1.msra.mxu0 %v361
    %404 = vmatprep.subr.mxu0 0.0
    %405 = vmatpush1.msra.mxu0 %v360
    %406 = vmatprep.subr.mxu0 0.0
    %407 = vmatpush1.msra.mxu0 %v359
    %408 = vmatprep.subr.mxu0 0.0
    %409 = vmatpush1.msra.mxu0 %v358
    %410 = vmatprep.subr.mxu0 0.0
    %411 = vmatpush1.msra.mxu0 %v357
    %412 = vmatprep.subr.mxu0 0.0
    %413 = vmatpush2.msra.mxu0 0.0
    %414 = vmatprep.subr.mxu0 0.0
    %415 = vmatpush2.msra.mxu0 0.0
    %416 = vmatprep.subr.mxu0 0.0
    %417 = vmatpush2.msra.mxu0 0.0
    %418 = vmatprep.subr.mxu0 0.0
    %419 = vmatpush2.msra.mxu0 0.0
    %420 = vmatprep.subr.mxu0 0.0
    %421 = vmatpush2.msra.mxu0 0.0
    %422 = vmatprep.subr.mxu0 0.0
    %423 = vmatpush2.msra.mxu0 0.0
    %424 = vmatprep.subr.mxu0 0.0
    %425 = vmatpush2.msra.mxu0 0.0
    %426 = vmatprep.subr.mxu0 0.0
    %427 = vmatpush2.msra.mxu0 0.0
    %428 = vmatprep.subr.mxu0 0.0
    %429 = vmatpush2.msra.mxu0 0.0
    %430 = vmatprep.subr.mxu0 0.0
    %431 = vmatpush2.msra.mxu0 0.0
    %432 = vmatprep.subr.mxu0 0.0
    %433 = vmatpush2.msra.mxu0 0.0
    %434 = vmatprep.subr.mxu0 0.0
    %435 = vmatpush2.msra.mxu0 0.0
    %436 = vmatprep.subr.mxu0 0.0
    %437 = vmatpush2.msra.mxu0 0.0
    %438 = vmatprep.subr.mxu0 0.0
    %439 = vmatpush2.msra.mxu0 0.0
    %440 = vmatprep.subr.mxu0 0.0
    %441 = vmatpush2.msra.mxu0 0.0
    %442 = vmatprep.subr.mxu0 0.0
    %443 = vmatpush2.msra.mxu0 0.0
    %444 = vmatprep.mubr.f32.mxu0 0.0
    %445 = vmatmul.mubr.f32.gmra.mxu0 %v356
    %v446 = vpop.f32.mrf.mxu0
    %v447 = vadd.f32 %v378, %v446
    %v448 = vpop.f32.mrf.mxu0
    %449 = vdwg.mxu0
    %v450 = vtanh.pop %v447
    %451 = vst [vmem:[#allocation10] sm:$0xff] %v450
    // Predicated region
    $region42: #{actor_forward_padded.1} parent=1 // pred_check
      _
    $region43: #{actor_forward_padded.1} parent=1 // pred_check_branch
      %453 = sbr.rel (0) target = $region45
    $region44: #{actor_forward_padded.1} parent=1 // pred_region
      %s455 = ssub.s32 128, 128
      %456 = vsyncadd [#allocation4], %s455
      %s458 = sshll.u32 [#allocation10], 4
      %s459 = int_to_ptr.vmem [resolvable:$true] %s458
      %461 = dma.vmem_to_hbm [thread:$0]  %s459, 128, %s6, [#allocation4]
    $region45: #{actor_forward_padded.1} parent=1 // pred_fallthru
      _
    // Predicated region
    $region46: #{actor_forward_padded.1} parent=1 // pred_check
      _
    $region47: #{actor_forward_padded.1} parent=1 // pred_check_branch
      %463 = sbr.rel (0) target = $region49
    $region48: #{actor_forward_padded.1} parent=1 // pred_region
      %464 = dma.done [#allocation4], 128
    $region49: #{actor_forward_padded.1} parent=1 // pred_fallthru
      _
    %465 = vsyncpa [#allocation3], 1
    %466 = vsyncpa [#allocation6], 1
    %467 = vsyncpa [#allocation9], 1
    %468 = vsyncpa [#allocation4], 1

</llo_original>
